<compile_context>
chip_gen: v5e
topology: v5e:2x2
jax: 0.10.0
libtpu: 0.0.40
codegen_flags: <defaults>
</compile_context>

<pallas_src>
import jax
import jax.numpy as jnp
from jax.experimental import pallas as pl
from jax.experimental.pallas import tpu as pltpu

PAD_TOKEN_ID = 0


def _pool_score_kernel(idx_ref, hs_hbm, w_ref, out_ref, buf, sems):
    """Gather last-token rows for one batch chunk and score them.

    idx_ref : SMEM (B_pad,) int32 -- flat row indices into hs_hbm (prefetch).
    hs_hbm  : HBM  (B*S, H)       -- hidden states, raw (memory_space=ANY).
    w_ref   : VMEM (1, H)         -- scorer weight (Linear(H,1), no bias).
    out_ref : VMEM (TB, 1)        -- per-row logits for this chunk.
    buf     : VMEM (TB, H)        -- scratch for the gathered rows.
    sems    : DMA semaphores (TB,).
    """
    c = pl.program_id(0)
    tb = buf.shape[0]

    # Issue every row-gather DMA for this chunk before waiting on any of them
    # so they all overlap.
    @pl.loop(0, tb)
    def _issue(b):
        i = idx_ref[c * tb + b]
        pltpu.make_async_copy(
            hs_hbm.at[pl.ds(i, 1), :],
            buf.at[pl.ds(b, 1), :],
            sems.at[b],
        ).start()

    @pl.loop(0, tb)
    def _wait(b):
        # Source index is irrelevant for the wait (only shape + semaphore
        # matter); use 0 to avoid an SMEM reload after the DMA wait.
        pltpu.make_async_copy(
            hs_hbm.at[pl.ds(0, 1), :],
            buf.at[pl.ds(b, 1), :],
            sems.at[b],
        ).wait()

    rows = buf[...].astype(jnp.float32)              # (TB, H)
    w = w_ref[...].astype(jnp.float32)               # (1, H)
    # Degenerate (TB,H)@(H,1) matmul -> VPU broadcast-multiply + lane reduce
    # (N=1 would waste the MXU).
    out_ref[...] = jnp.sum(rows * w, axis=-1, keepdims=True)


def pool_score(input_ids, hidden_states, scorer_w, *, rows_per_step=256):
    """input_ids: [B,S] int32; hidden_states: [B,S,H]; scorer_w: [1,H] f32."""
    B, S = input_ids.shape
    H = hidden_states.shape[-1]

    # sequence_lengths = (ids != pad).sum(-1) - 1, computed in the wrapper so
    # the kernel only sees B scalars in SMEM.
    seq_len = jnp.sum((input_ids != PAD_TOKEN_ID).astype(jnp.int32), axis=-1) - 1
    # All-pad rows give -1; PyTorch indexing with -1 selects the last
    # position, so replicate that explicitly.
    seq_len = jnp.where(seq_len < 0, S - 1, seq_len)
    flat_idx = (jnp.arange(B, dtype=jnp.int32) * S + seq_len).astype(jnp.int32)

    # Chunk the batch so VMEM usage stays bounded for very large B; pad the
    # index vector so every grid step handles a full chunk.
    tb = min(B, rows_per_step)
    num_chunks = pl.cdiv(B, tb)
    b_pad = num_chunks * tb
    if b_pad != B:
        flat_idx = jnp.concatenate(
            [flat_idx, jnp.zeros((b_pad - B,), jnp.int32)])

    hs_flat = hidden_states.reshape(B * S, H)
    w_row = scorer_w.reshape(1, H)

    itemsize = jnp.dtype(hidden_states.dtype).itemsize
    cost = pl.CostEstimate(
        flops=2 * b_pad * H,
        transcendentals=0,
        bytes_accessed=b_pad * H * itemsize + H * 4 + b_pad * 4 + b_pad * 4,
    )

    out = pl.pallas_call(
        _pool_score_kernel,
        out_shape=jax.ShapeDtypeStruct((b_pad, 1), jnp.float32),
        grid_spec=pltpu.PrefetchScalarGridSpec(
            num_scalar_prefetch=1,
            grid=(num_chunks,),
            in_specs=[
                # Hidden states stay in HBM; rows are gathered manually.
                pl.BlockSpec(memory_space=pl.ANY),
                # Scorer weight: same tiny VMEM block every step.
                pl.BlockSpec((1, H), lambda c, idx: (0, 0)),
            ],
            out_specs=pl.BlockSpec((tb, 1), lambda c, idx: (c, 0)),
            scratch_shapes=[
                pltpu.VMEM((tb, H), hidden_states.dtype),
                pltpu.SemaphoreType.DMA((tb,)),
            ],
        ),
        compiler_params=pltpu.CompilerParams(
            dimension_semantics=("parallel",),
        ),
        cost_estimate=cost,
    )(flat_idx, hs_flat, w_row)
    return out[:B]


# ----------------------------------------------------------------------------
# Glue: synthetic deterministic "base model" (embedding lookup stub) + params
# ----------------------------------------------------------------------------
def init_params(key, vocab_size, hidden_size):
    k_emb, k_w = jax.random.split(key)
    # base_model stub: embedding table
    emb = jax.random.normal(k_emb, (vocab_size, hidden_size), dtype=jnp.float32) * 0.02
    # scorer.weight ~ trunc_normal(mean=0, std=0.01, a=-1, b=1), PyTorch
    # Linear(H, 1) layout [1, H].
    w = jnp.clip(
        0.01 * jax.random.normal(k_w, (1, hidden_size), dtype=jnp.float32),
        -1.0, 1.0,
    )
    return {"emb": emb, "scorer_w": w}


def base_model_stub(params, input_ids, attention_mask):
    # TODO(synk): stand-in for base_model(...).last_hidden_state
    hs = jnp.take(params["emb"], input_ids, axis=0)          # (B, S, H)
    hs = hs * attention_mask[..., None].astype(hs.dtype)
    return hs


def rm_pair_forward(params, positive, att_mask_pos, negtive=None, att_mask_neg=None):
    hs_pos = base_model_stub(params, positive, att_mask_pos)
    logits_pos = pool_score(positive, hs_pos, params["scorer_w"])   # (B, 1)
    loss = None
    if negtive is not None:
        hs_neg = base_model_stub(params, negtive, att_mask_neg)
        logits_neg = pool_score(negtive, hs_neg, params["scorer_w"])
        loss = jnp.sum(logits_neg - logits_pos)
    return {"loss": loss, "score": logits_pos}


if __name__ == "__main__":
    B, S, H, VOCAB = 2, 8, 32, 50
    key = jax.random.PRNGKey(0)
    k_params, k_pos, k_neg = jax.random.split(key, 3)

    params = init_params(k_params, VOCAB, H)

    # token ids in [1, VOCAB); right-pad with PAD_TOKEN_ID=0, different lengths
    positive = jax.random.randint(k_pos, (B, S), 1, VOCAB, dtype=jnp.int32)
    positive = positive.at[0, 6:].set(PAD_TOKEN_ID).at[1, 4:].set(PAD_TOKEN_ID)
    negtive = jax.random.randint(k_neg, (B, S), 1, VOCAB, dtype=jnp.int32)
    negtive = negtive.at[0, 5:].set(PAD_TOKEN_ID).at[1, 7:].set(PAD_TOKEN_ID)

    att_mask_pos = (positive != PAD_TOKEN_ID).astype(jnp.int32)
    att_mask_neg = (negtive != PAD_TOKEN_ID).astype(jnp.int32)

    out = rm_pair_forward(params, positive, att_mask_pos, negtive, att_mask_neg)
    jax.block_until_ready(out["score"])
    jax.block_until_ready(out["loss"])

    # correctness check vs pure-JAX reference
    def ref_pool_score(ids, hs, w):
        sl = jnp.sum((ids != PAD_TOKEN_ID).astype(jnp.int32), axis=-1) - 1
        pooled = hs[jnp.arange(ids.shape[0]), sl]
        return pooled @ w.T                                   # w is (1, H)

    hs_pos_ref = base_model_stub(params, positive, att_mask_pos)
    hs_neg_ref = base_model_stub(params, negtive, att_mask_neg)
    ref_pos = ref_pool_score(positive, hs_pos_ref, params["scorer_w"])
    ref_neg = ref_pool_score(negtive, hs_neg_ref, params["scorer_w"])
    ref_loss = jnp.sum(ref_neg - ref_pos)

    assert jnp.allclose(out["score"], ref_pos, atol=1e-5), (out["score"], ref_pos)
    assert jnp.allclose(out["loss"], ref_loss, atol=1e-5), (out["loss"], ref_loss)

    print("KERNEL_OK")
</pallas_src>

<mosaic_0001>
module attributes {stable_mosaic.version = 11 : i64} {
  func.func @_pool_score_kernel(%arg0: i32, %arg1: memref<2xi32, #tpu.memory_space<smem>>, %arg2: memref<16x32xf32, #tpu.memory_space<any>>, %arg3: memref<1x32xf32, #tpu.memory_space<vmem>>, %arg4: memref<2x1xf32, #tpu.memory_space<vmem>>, %arg5: memref<2x32xf32, #tpu.memory_space<vmem>>, %arg6: memref<2x!tpu.dma_semaphore, #tpu.memory_space<semaphore_mem>>) attributes {dimension_semantics = [#tpu.dimension_semantics<parallel>], iteration_bounds = array<i64: 1>, scalar_prefetch = 1 : i64, scratch_operands = 2 : i64, tpu.core_type = #tpu.core_type<tc>, window_params = [{}, {pipeline_mode = #tpu.pipeline_mode<synchronous>, transform_indices = @transform_1, window_bounds = array<i64: 1, 32>}, {transform_indices = @transform_2, window_bounds = array<i64: 2, 1>}]} {
    %c0_i32 = arith.constant 0 : i32
    %c2_i32 = arith.constant 2 : i32
    %0 = arith.addi %c0_i32, %c2_i32 : i32
    %c1_i32 = arith.constant 1 : i32
    scf.for %arg7 = %c0_i32 to %0 step %c1_i32  : i32 {
      %c1_i32_10 = arith.constant 1 : i32
      %9 = arith.muli %arg7, %c1_i32_10 : i32
      %c0_i32_11 = arith.constant 0 : i32
      %10 = arith.addi %c0_i32_11, %9 : i32
      %c2_i32_12 = arith.constant 2 : i32
      %11 = arith.muli %arg0, %c2_i32_12 : i32
      %12 = arith.addi %11, %10 : i32
      %13 = arith.index_cast %12 : i32 to index
      %14 = memref.load %arg1[%13] : memref<2xi32, #tpu.memory_space<smem>>
      %c0_i32_13 = arith.constant 0 : i32
      %15 = tpu.memref_slice %arg2[%14, %c0_i32_13] : memref<16x32xf32, #tpu.memory_space<any>> -> memref<1x32xf32, #tpu.memory_space<any>>
      %c0_i32_14 = arith.constant 0 : i32
      %16 = tpu.memref_slice %arg5[%10, %c0_i32_14] : memref<2x32xf32, #tpu.memory_space<vmem>> -> memref<1x32xf32, #tpu.memory_space<vmem>>
      %17 = tpu.memref_slice %arg6[%10] : memref<2x!tpu.dma_semaphore, #tpu.memory_space<semaphore_mem>> -> memref<1x!tpu.dma_semaphore, #tpu.memory_space<semaphore_mem>>
      %18 = tpu.memref_squeeze %17 : memref<1x!tpu.dma_semaphore, #tpu.memory_space<semaphore_mem>> -> memref<!tpu.dma_semaphore, #tpu.memory_space<semaphore_mem>>
      tpu.enqueue_dma source(%15 : memref<1x32xf32, #tpu.memory_space<any>>) target(%16 : memref<1x32xf32, #tpu.memory_space<vmem>>) target_semaphore(%18 : memref<!tpu.dma_semaphore, #tpu.memory_space<semaphore_mem>>)
    }
    %c2_i32_0 = arith.constant 2 : i32
    %c0_i32_1 = arith.constant 0 : i32
    %c2_i32_2 = arith.constant 2 : i32
    %1 = arith.addi %c0_i32_1, %c2_i32_2 : i32
    %c1_i32_3 = arith.constant 1 : i32
    scf.for %arg7 = %c0_i32_1 to %1 step %c1_i32_3  : i32 {
      %c1_i32_10 = arith.constant 1 : i32
      %9 = arith.muli %arg7, %c1_i32_10 : i32
      %c0_i32_11 = arith.constant 0 : i32
      %10 = arith.addi %c0_i32_11, %9 : i32
      %c0_i32_12 = arith.constant 0 : i32
      %c0_i32_13 = arith.constant 0 : i32
      %11 = tpu.memref_slice %arg2[%c0_i32_12, %c0_i32_13] : memref<16x32xf32, #tpu.memory_space<any>> -> memref<1x32xf32, #tpu.memory_space<any>>
      %c0_i32_14 = arith.constant 0 : i32
      %12 = tpu.memref_slice %arg5[%10, %c0_i32_14] : memref<2x32xf32, #tpu.memory_space<vmem>> -> memref<1x32xf32, #tpu.memory_space<vmem>>
      %13 = tpu.memref_slice %arg6[%10] : memref<2x!tpu.dma_semaphore, #tpu.memory_space<semaphore_mem>> -> memref<1x!tpu.dma_semaphore, #tpu.memory_space<semaphore_mem>>
      %14 = tpu.memref_squeeze %13 : memref<1x!tpu.dma_semaphore, #tpu.memory_space<semaphore_mem>> -> memref<!tpu.dma_semaphore, #tpu.memory_space<semaphore_mem>>
      tpu.wait_dma2 semaphore(%14 : memref<!tpu.dma_semaphore, #tpu.memory_space<semaphore_mem>>) src(%11 : memref<1x32xf32, #tpu.memory_space<any>>) dst(%12 : memref<1x32xf32, #tpu.memory_space<vmem>>)
    }
    %c2_i32_4 = arith.constant 2 : i32
    %c0 = arith.constant 0 : index
    %c0_5 = arith.constant 0 : index
    %2 = vector.load %arg5[%c0, %c0_5] : memref<2x32xf32, #tpu.memory_space<vmem>>, vector<2x32xf32>
    %c0_6 = arith.constant 0 : index
    %c0_7 = arith.constant 0 : index
    %3 = vector.load %arg3[%c0_6, %c0_7] : memref<1x32xf32, #tpu.memory_space<vmem>>, vector<1x32xf32>
    %4 = vector.broadcast %3 : vector<1x32xf32> to vector<2x32xf32>
    %5 = arith.mulf %2, %4 : vector<2x32xf32>
    %cst = arith.constant dense<0.000000e+00> : vector<2xf32>
    %6 = vector.multi_reduction <add>, %5, %cst [1] : vector<2x32xf32> to vector<2xf32>
    %7 = vector.shape_cast %6 : vector<2xf32> to vector<2x1xf32>
    %c0_8 = arith.constant 0 : index
    %c0_9 = arith.constant 0 : index
    %8 = vector.load %arg4[%c0_8, %c0_9] : memref<2x1xf32, #tpu.memory_space<vmem>>, vector<2x1xf32>
    tpu.vector_store %arg4[%c0_8, %c0_9], %7 {strides = array<i32>} : memref<2x1xf32, #tpu.memory_space<vmem>>, vector<2x1xf32>,
    return
  }
  func.func @transform_1(%arg0: i32, %arg1: memref<2xi32, #tpu.memory_space<smem>>) -> (i32, i32) {
    %c0_i32 = arith.constant 0 : i32
    %c0_i32_0 = arith.constant 0 : i32
    %c0_i32_1 = arith.constant 0 : i32
    return %c0_i32, %c0_i32_0 : i32, i32
  }
  func.func @transform_2(%arg0: i32, %arg1: memref<2xi32, #tpu.memory_space<smem>>) -> (i32, i32) {
    %c0_i32 = arith.constant 0 : i32
    %c0_i32_0 = arith.constant 0 : i32
    return %arg0, %c0_i32 : i32, i32
  }
}

</mosaic_0001>

<llo_original>
// kernel: tpu_custom_call.1
$region0: #{tpu_custom_call.1}
  #allocation0 [shape = 'u32[]', space=smem, size = 0x4, offset = 0x4, fixed_abs, tag = 'smem constant byte address 0x4 - core index']
  #allocation1 [shape = 'u32[72,128]{1,0:T(1,128)}', space=vmem, size = 0x9000, scoped, tag = 'internal scratch']
  #allocation2 [shape = 'f32[2,32]{1,0:T(2,128)}', space=vmem, size = 0x400, scoped, tag = 'scratch operand']
  #allocation3 [shape = 's32[2]{0}', space=sflag, size = 0x8, scoped, tag = 'scratch operand']
  #allocation4 [shape = 's32[1]{0}', space=sflag, size = 0x4, scoped, tag = 'scoped memory for tpu_custom_call.1']
  #allocation5 [shape = 'u8[512]{0}', space=smem, size = 0x200, scoped, tag = 'prefetched SMEM operand 0']
  #allocation6 [shape = 's32[]', space=sflag, size = 0x4, offset = 0, fixed_abs, tag = 'sflag constant byte address 0x0 - dummy sync flag']
  #allocation7 [shape = 's32[]', space=sflag, size = 0x4, offset = 0, fixed_abs, tag = 'sflag constant byte address 0x0 - dummy sync flag']
  #allocation8 [shape = 'u32[]', space=smem, size = 0x4, offset = 0x44, fixed_abs, tag = 'smem constant byte address 0x44 - assertion arg 0']
  #allocation9 [shape = 'u32[]', space=smem, size = 0x4, offset = 0x48, fixed_abs, tag = 'smem constant byte address 0x48 - assertion arg 1']
  %s0 = inlined_call_operand.hbm [shape: s32[2], index: 0, kind: input, shape index: {}]
  %s1 = inlined_call_operand.hbm [shape: f32[16,32], index: 1, kind: input, shape index: {}]
  %s2 = inlined_call_operand.vmem [shape: f32[1,32], index: 2, kind: input, shape index: {}]
  %s3 = inlined_call_operand.vmem [shape: f32[2,1], index: 3, kind: output, shape index: {}]
  %s4 = sld [smem:[#allocation0]]
  $region32: #{tpu_custom_call.1} parent=0
    _
  %s6 = ssub.s32 1, %s4
  %s7 = scalar_select 0, %s6, %s4
  %s9 = sshll.u32 %s0, 4
  %s10 = int_to_ptr.hbm [resolvable:$true] %s9
  %12 = dma.hbm_to_smem %s10, 16, [#allocation5], [#allocation4]
  %14 = dma.done [#allocation4], 16
  %15 = sfence
  // Predicated region
  $region2: #{tpu_custom_call.1} parent=0 // pred_check
    _
  $region3: #{tpu_custom_call.1} parent=0 // pred_check_branch
    %17 = sbr.rel (0) target = $region5
  $region4: #{tpu_custom_call.1} parent=0 // pred_region
    _
  $region5: #{tpu_custom_call.1} parent=0 // pred_fallthru
    _
  loop: start=0, step=1, limit=2
  $region6: #{tpu_custom_call.1} parent=0 // loop_pre_header
    _
  $region7: #{tpu_custom_call.1} parent=0 // loop_header
    %s19 = sphi 0, %s23
    %p20 = scmp.ge.s32.totalorder %s19, 2
  $region8: #{tpu_custom_call.1} parent=0 // loop_header_branch
    %22 = sbr.rel (%p20) target = $region12
  $region9: #{tpu_custom_call.1} parent=0 // loop_body
    %s24 = smul.u32 0, 2
    %s25 = sadd.s32 %s24, %s19
    %s26 = sld [smem:[#allocation5 + %s25]]
    %s27 = scalar_lea.hbm %s1, %s26
    %s28 = scalar_lea.vmem [#allocation2], %s19
    %s29 = scalar_lea.sflag [#allocation3], %s19
    // Predicated region
    $region13: #{tpu_custom_call.1} parent=9 // pred_check
      _
    $region14: #{tpu_custom_call.1} parent=9 // pred_check_branch
      %31 = sbr.rel target = $region16
    $region15: #{tpu_custom_call.1} parent=9 // pred_region
      %32 = sst [smem:[#allocation8]] [#allocation7]
      %33 = sst [smem:[#allocation9]] [#allocation6]
    $region16: #{tpu_custom_call.1} parent=9 // pred_fallthru
      _
    %35 = shalt.err (0)
    %s37 = sshll.u32 %s27, 4
    %s38 = int_to_ptr.hbm [resolvable:$true] %s37
    %s39 = sshll.u32 %s28, 4
    %s40 = int_to_ptr.vmem [resolvable:$true] %s39
    %42 = dma.hbm_to_vmem [thread:$0]  %s38, 16, %s40, %s29
  $region10: #{tpu_custom_call.1} parent=0 // loop_footer
    %s23 = sadd.s32 1, %s19
  $region11: #{tpu_custom_call.1} parent=0 // loop_footer_branch
    %18 = sbr.rel target = $region7
  $region12: #{tpu_custom_call.1} parent=0 // loop_exit
    _
  loop: start=0, step=1, limit=2
  $region17: #{tpu_custom_call.1} parent=0 // loop_pre_header
    _
  $region18: #{tpu_custom_call.1} parent=0 // loop_header
    %s44 = sphi 0, %s48
    %p45 = scmp.ge.s32.totalorder %s44, 2
  $region19: #{tpu_custom_call.1} parent=0 // loop_header_branch
    %47 = sbr.rel (%p45) target = $region23
  $region20: #{tpu_custom_call.1} parent=0 // loop_body
    %s49 = scalar_lea.sflag [#allocation3], %s44
    %s50 = smul.u32 1, 1
    %s51 = sshll.u32 %s50, 4
    %52 = dma.done %s49, %s51
  $region21: #{tpu_custom_call.1} parent=0 // loop_footer
    %s48 = sadd.s32 1, %s44
  $region22: #{tpu_custom_call.1} parent=0 // loop_footer_branch
    %43 = sbr.rel target = $region18
  $region23: #{tpu_custom_call.1} parent=0 // loop_exit
    _
  %v53 = vld [vmem:[#allocation2] sm:$0x3]
  %v54 = vld [vmem:[%s2] sm:$0x1]
  %v56 = vperm.slane %v54, 0
  %v58 = vmul.f32 %v53, %v56
  %vm59 = vcmask 254976
  %v60 = vsel %vm59, %v58, 0.0
  %61 = vadd.xlane.f32.xlu0 %v60
  %v62 = vpop.xlane.xlu0 %61
  %vm63 = vcmask 1024
  %64 = vst.msk [vmem:[%s3] sm:$0x3] %vm63, %v62
  // Predicated region
  $region24: #{tpu_custom_call.1} parent=0 // pred_check
    _
  $region25: #{tpu_custom_call.1} parent=0 // pred_check_branch
    %66 = sbr.rel (0) target = $region27
  $region26: #{tpu_custom_call.1} parent=0 // pred_region
    _
  $region27: #{tpu_custom_call.1} parent=0 // pred_fallthru
    _
  // Predicated region
  $region28: #{tpu_custom_call.1} parent=0 // pred_check
    _
  $region29: #{tpu_custom_call.1} parent=0 // pred_check_branch
    %68 = sbr.rel (0) target = $region31
  $region30: #{tpu_custom_call.1} parent=0 // pred_region
    _
  $region31: #{tpu_custom_call.1} parent=0 // pred_fallthru
    _
  %69 = vsyncmov [#allocation3]
  %s70 = vpop.sfrf %69
  %p71 = scmp.eq.s32.totalorder %s70, 0
  %p72 = pneg %p71
  %74 = shalt.err (%p72)
  %s75 = scalar_lea.sflag [#allocation3], 1
  %76 = vsyncmov %s75
  %s77 = vpop.sfrf %76
  %p78 = scmp.eq.s32.totalorder %s77, 0
  %p79 = pneg %p78
  %81 = shalt.err (%p79)

</llo_original>
